<compile_context>
chip_gen: v6e
topology: v6e:2x2x1
jax: 0.10.0
libtpu: 0.0.40
codegen_flags: <defaults>
</compile_context>

<pallas_src>
import jax
import jax.numpy as jnp
from jax.experimental import pallas as pl
from jax.experimental.pallas import tpu as pltpu


def _round_up(x, m):
    return (x + m - 1) // m * m


def conv_bn_silu(x_nchw, w_oihw, bn_gamma, bn_beta, bn_mean, bn_var,
                 *, stride=1, eps=1e-5, compute_dtype=jnp.float32, b_tile=None):
    """Conv2d(k=3, s=1, 'same', bias=False) + BatchNorm2d(eval) + SiLU.

    x_nchw: [N, C1, H, W]; w_oihw: [C2, C1, KH, KW] (PyTorch layouts).
    Returns f32 [N, C2, H, W].
    """
    assert stride == 1, "this kernel implements s=1 'same' conv"
    N, C1, H, W = x_nchw.shape
    C2, C1w, KH, KW = w_oihw.shape
    assert C1 == C1w, "groups=1 only"
    ph, pw = KH // 2, KW // 2                      # autopad for d=1
    KK = KH * KW

    # Geometry of the flattened per-image frame:
    #   Wq   : padded row width ('same' column halo both sides)
    #   QQ   : per-image output frame length = H valid rows * Wq columns
    #   QQL  : QQ rounded up to a lane tile (128) -> lane-dense stores / dot N
    #   Hq   : padded rows, large enough that every tap slice of length QQL
    #          stays inside the slab (extra reads land in zero padding and are
    #          cropped by the wrapper).
    Wq = W + 2 * pw
    QQ = H * Wq
    QQL = _round_up(QQ, 128)
    s_max = (KH - 1) * Wq + (KW - 1)               # largest static tap shift
    Hq = max(H + 2 * ph, -(-(s_max + QQL) // Wq))  # ceil division
    SLAB = Hq * Wq
    itemsize = jnp.dtype(compute_dtype).itemsize

    # ---- wrapper glue: ONE pad (conv halo + slice headroom), bitcast reshape ----
    xq = jnp.pad(x_nchw.astype(compute_dtype),
                 ((0, 0), (0, 0), (ph, Hq - H - ph), (pw, pw)))   # [N,C1,Hq,Wq]
    xf = xq.reshape(N, C1, SLAB)                                   # no copy

    # Weights [C2,C1,KH,KW] -> [C2,KH,KW,C1] -> [C2, KK*C1] (matches scratch
    # row ordering tap-major, channel-minor).  BN scale stays in the f32
    # epilogue: do not fold it into (possibly bf16) weights.
    w2 = jnp.transpose(w_oihw.astype(jnp.float32), (0, 2, 3, 1))
    w2 = w2.reshape(C2, KK * C1).astype(compute_dtype)

    inv_std = jax.lax.rsqrt(bn_var.astype(jnp.float32) + eps)
    scale = (bn_gamma.astype(jnp.float32) * inv_std).reshape(C2, 1)
    bias = (bn_beta.astype(jnp.float32)
            - bn_mean.astype(jnp.float32) * bn_gamma.astype(jnp.float32) * inv_std
            ).reshape(C2, 1)

    # ---- images per grid step: wide lane dim, but keep (double-buffered)
    # per-step tiles well inside scoped VMEM on every generation.
    if b_tile is None:
        budget = 8 * 2 ** 20
        b_tile = 1
        for cand in range(min(N, 8), 0, -1):
            if N % cand:
                continue
            step_bytes = (cand * C1 * SLAB * itemsize          # input block
                          + cand * C2 * QQL * 4                # output block
                          + KK * C1 * cand * QQL * itemsize)   # stacked-tap scratch
            if 2 * step_bytes <= budget:
                b_tile = cand
                break
    assert N % b_tile == 0, (N, b_tile)

    step_bytes = (b_tile * C1 * SLAB * itemsize + b_tile * C2 * QQL * 4
                  + KK * C1 * b_tile * QQL * itemsize + C2 * KK * C1 * itemsize)
    vmem_limit = int(min(max(4 * step_bytes, 16 * 2 ** 20), 48 * 2 ** 20))

    def kernel(x_ref, w_ref, scale_ref, bias_ref, o_ref, xs_ref):
        # x_ref  : [B, C1, SLAB]   padded, flattened input slabs (compute_dtype)
        # w_ref  : [C2, KK*C1]     resident weights
        # scale_ref, bias_ref : [C2, 1] f32 BN affine (eval mode)
        # o_ref  : [B, C2, QQL]    f32 output frames (lane-dense)
        # xs_ref : [KK*C1, B*QQL]  VMEM scratch: stacked shifted taps
        for b in range(b_tile):
            slab = x_ref[b]                                   # [C1, SLAB] once
            for t in range(KK):
                i, j = divmod(t, KW)
                s = i * Wq + j                                # static tap shift
                xs_ref[t * C1:(t + 1) * C1, b * QQL:(b + 1) * QQL] = \
                    slab[:, s:s + QQL]
        # One fused MXU matmul: [C2, KK*C1] @ [KK*C1, B*QQL], f32 accumulation.
        acc = jnp.dot(w_ref[...], xs_ref[...],
                      preferred_element_type=jnp.float32)     # [C2, B*QQL] f32
        y = acc * scale_ref[...] + bias_ref[...]              # BN (eval), f32
        y = y * jax.nn.sigmoid(y)                             # SiLU (EUP)
        for b in range(b_tile):
            o_ref[b] = y[:, b * QQL:(b + 1) * QQL].astype(o_ref.dtype)

    out_frames = pl.pallas_call(
        kernel,
        out_shape=jax.ShapeDtypeStruct((N, C2, QQL), jnp.float32),
        grid_spec=pltpu.PrefetchScalarGridSpec(
            num_scalar_prefetch=0,
            grid=(N // b_tile,),
            in_specs=[
                pl.BlockSpec((b_tile, C1, SLAB), lambda n: (n, 0, 0)),
                pl.BlockSpec((C2, KK * C1), lambda n: (0, 0)),   # resident
                pl.BlockSpec((C2, 1), lambda n: (0, 0)),
                pl.BlockSpec((C2, 1), lambda n: (0, 0)),
            ],
            out_specs=pl.BlockSpec((b_tile, C2, QQL), lambda n: (n, 0, 0)),
            scratch_shapes=[pltpu.VMEM((KK * C1, b_tile * QQL), compute_dtype)],
        ),
        compiler_params=pltpu.CompilerParams(
            dimension_semantics=("parallel",),
            vmem_limit_bytes=vmem_limit),
    )(xf, w2, scale, bias)

    # Valid outputs live at frame index h*Wq + w with w < W; crop (XLA slice).
    out = out_frames[:, :, :QQ].reshape(N, C2, H, Wq)[:, :, :, :W]
    return out


def reference(x_nchw, w_oihw, bn_gamma, bn_beta, bn_mean, bn_var, eps=1e-5):
    y = jax.lax.conv_general_dilated(
        x_nchw, w_oihw, window_strides=(1, 1), padding="SAME",
        dimension_numbers=("NCHW", "OIHW", "NCHW"))
    scale = (bn_gamma / jnp.sqrt(bn_var + eps)).reshape(1, -1, 1, 1)
    bias = (bn_beta - bn_mean * bn_gamma / jnp.sqrt(bn_var + eps)).reshape(1, -1, 1, 1)
    z = y * scale + bias
    return z * jax.nn.sigmoid(z)


if __name__ == "__main__":
    # Module config: Conv(c1=4, c2=8, k=3, s=1) -> autopad p=1
    N, C1, H, W = 2, 4, 16, 16
    C2, K = 8, 3

    key = jax.random.PRNGKey(0)
    kx, kw, kg, kb, km, kv = jax.random.split(key, 6)
    x = jax.random.normal(kx, (N, C1, H, W), dtype=jnp.float32)
    w = jax.random.normal(kw, (C2, C1, K, K), dtype=jnp.float32) * 0.1
    bn_gamma = jax.random.normal(kg, (C2,), dtype=jnp.float32) * 0.1 + 1.0
    bn_beta = jax.random.normal(kb, (C2,), dtype=jnp.float32) * 0.1
    bn_mean = jax.random.normal(km, (C2,), dtype=jnp.float32) * 0.1
    bn_var = jnp.abs(jax.random.normal(kv, (C2,), dtype=jnp.float32)) * 0.5 + 0.5

    ref = jax.block_until_ready(reference(x, w, bn_gamma, bn_beta, bn_mean, bn_var))

    # f32 operands: tight check.
    out = conv_bn_silu(x, w, bn_gamma, bn_beta, bn_mean, bn_var)
    out = jax.block_until_ready(out)
    assert out.shape == (N, C2, H, W), out.shape
    assert jnp.allclose(out, ref, atol=1e-4, rtol=1e-4), \
        float(jnp.max(jnp.abs(out - ref)))

    # bf16 matmul operands (v5e/v6e/v7x MXU), f32 accumulation + f32 BN/SiLU
    # epilogue (BN scale NOT folded into bf16 weights): loose check.
    out_bf16 = conv_bn_silu(x, w, bn_gamma, bn_beta, bn_mean, bn_var,
                            compute_dtype=jnp.bfloat16)
    out_bf16 = jax.block_until_ready(out_bf16)
    assert out_bf16.shape == (N, C2, H, W), out_bf16.shape
    assert jnp.allclose(out_bf16, ref, atol=1e-1, rtol=1e-1), \
        float(jnp.max(jnp.abs(out_bf16 - ref)))

    print("KERNEL_OK")
</pallas_src>

<mosaic_0001>
module attributes {stable_mosaic.version = 11 : i64} {
  func.func @kernel(%arg0: i32, %arg1: memref<2x4x432xf32, #tpu.memory_space<vmem>>, %arg2: memref<8x36xf32, #tpu.memory_space<vmem>>, %arg3: memref<8x1xf32, #tpu.memory_space<vmem>>, %arg4: memref<8x1xf32, #tpu.memory_space<vmem>>, %arg5: memref<2x8x384xf32, #tpu.memory_space<vmem>>, %arg6: memref<36x768xf32, #tpu.memory_space<vmem>>) attributes {dimension_semantics = [#tpu.dimension_semantics<parallel>], iteration_bounds = array<i64: 1>, scalar_prefetch = 0 : i64, scratch_operands = 1 : i64, tpu.core_type = #tpu.core_type<tc>, window_params = [{transform_indices = @transform_0, window_bounds = array<i64: 2, 4, 432>}, {pipeline_mode = #tpu.pipeline_mode<synchronous>, transform_indices = @transform_1, window_bounds = array<i64: 8, 36>}, {pipeline_mode = #tpu.pipeline_mode<synchronous>, transform_indices = @transform_2, window_bounds = array<i64: 8, 1>}, {pipeline_mode = #tpu.pipeline_mode<synchronous>, transform_indices = @transform_3, window_bounds = array<i64: 8, 1>}, {transform_indices = @transform_4, window_bounds = array<i64: 2, 8, 384>}]} {
    %c0 = arith.constant 0 : index
    %c0_0 = arith.constant 0 : index
    %c0_1 = arith.constant 0 : index
    %0 = vector.load %arg1[%c0, %c0_0, %c0_1] : memref<2x4x432xf32, #tpu.memory_space<vmem>>, vector<1x4x432xf32>
    %1 = vector.shape_cast %0 : vector<1x4x432xf32> to vector<4x432xf32>
    %2 = vector.extract_strided_slice %1 {offsets = [0, 0], sizes = [4, 384], strides = [1, 1]} : vector<4x432xf32> to vector<4x384xf32>
    %c0_2 = arith.constant 0 : index
    %c0_3 = arith.constant 0 : index
    %3 = vector.load %arg6[%c0_2, %c0_3] : memref<36x768xf32, #tpu.memory_space<vmem>>, vector<4x384xf32>
    tpu.vector_store %arg6[%c0_2, %c0_3], %2 {strides = array<i32>} : memref<36x768xf32, #tpu.memory_space<vmem>>, vector<4x384xf32>,
    %4 = vector.extract_strided_slice %1 {offsets = [0, 1], sizes = [4, 384], strides = [1, 1]} : vector<4x432xf32> to vector<4x384xf32>
    %c4 = arith.constant 4 : index
    %c0_4 = arith.constant 0 : index
    %5 = vector.load %arg6[%c4, %c0_4] : memref<36x768xf32, #tpu.memory_space<vmem>>, vector<4x384xf32>
    tpu.vector_store %arg6[%c4, %c0_4], %4 {strides = array<i32>} : memref<36x768xf32, #tpu.memory_space<vmem>>, vector<4x384xf32>,
    %6 = vector.extract_strided_slice %1 {offsets = [0, 2], sizes = [4, 384], strides = [1, 1]} : vector<4x432xf32> to vector<4x384xf32>
    %c8 = arith.constant 8 : index
    %c0_5 = arith.constant 0 : index
    %7 = vector.load %arg6[%c8, %c0_5] : memref<36x768xf32, #tpu.memory_space<vmem>>, vector<4x384xf32>
    tpu.vector_store %arg6[%c8, %c0_5], %6 {strides = array<i32>} : memref<36x768xf32, #tpu.memory_space<vmem>>, vector<4x384xf32>,
    %8 = vector.extract_strided_slice %1 {offsets = [0, 18], sizes = [4, 384], strides = [1, 1]} : vector<4x432xf32> to vector<4x384xf32>
    %c12 = arith.constant 12 : index
    %c0_6 = arith.constant 0 : index
    %9 = vector.load %arg6[%c12, %c0_6] : memref<36x768xf32, #tpu.memory_space<vmem>>, vector<4x384xf32>
    tpu.vector_store %arg6[%c12, %c0_6], %8 {strides = array<i32>} : memref<36x768xf32, #tpu.memory_space<vmem>>, vector<4x384xf32>,
    %10 = vector.extract_strided_slice %1 {offsets = [0, 19], sizes = [4, 384], strides = [1, 1]} : vector<4x432xf32> to vector<4x384xf32>
    %c16 = arith.constant 16 : index
    %c0_7 = arith.constant 0 : index
    %11 = vector.load %arg6[%c16, %c0_7] : memref<36x768xf32, #tpu.memory_space<vmem>>, vector<4x384xf32>
    tpu.vector_store %arg6[%c16, %c0_7], %10 {strides = array<i32>} : memref<36x768xf32, #tpu.memory_space<vmem>>, vector<4x384xf32>,
    %12 = vector.extract_strided_slice %1 {offsets = [0, 20], sizes = [4, 384], strides = [1, 1]} : vector<4x432xf32> to vector<4x384xf32>
    %c20 = arith.constant 20 : index
    %c0_8 = arith.constant 0 : index
    %13 = vector.load %arg6[%c20, %c0_8] : memref<36x768xf32, #tpu.memory_space<vmem>>, vector<4x384xf32>
    tpu.vector_store %arg6[%c20, %c0_8], %12 {strides = array<i32>} : memref<36x768xf32, #tpu.memory_space<vmem>>, vector<4x384xf32>,
    %14 = vector.extract_strided_slice %1 {offsets = [0, 36], sizes = [4, 384], strides = [1, 1]} : vector<4x432xf32> to vector<4x384xf32>
    %c24 = arith.constant 24 : index
    %c0_9 = arith.constant 0 : index
    %15 = vector.load %arg6[%c24, %c0_9] : memref<36x768xf32, #tpu.memory_space<vmem>>, vector<4x384xf32>
    tpu.vector_store %arg6[%c24, %c0_9], %14 {strides = array<i32>} : memref<36x768xf32, #tpu.memory_space<vmem>>, vector<4x384xf32>,
    %16 = vector.extract_strided_slice %1 {offsets = [0, 37], sizes = [4, 384], strides = [1, 1]} : vector<4x432xf32> to vector<4x384xf32>
    %c28 = arith.constant 28 : index
    %c0_10 = arith.constant 0 : index
    %17 = vector.load %arg6[%c28, %c0_10] : memref<36x768xf32, #tpu.memory_space<vmem>>, vector<4x384xf32>
    tpu.vector_store %arg6[%c28, %c0_10], %16 {strides = array<i32>} : memref<36x768xf32, #tpu.memory_space<vmem>>, vector<4x384xf32>,
    %18 = vector.extract_strided_slice %1 {offsets = [0, 38], sizes = [4, 384], strides = [1, 1]} : vector<4x432xf32> to vector<4x384xf32>
    %c32 = arith.constant 32 : index
    %c0_11 = arith.constant 0 : index
    %19 = vector.load %arg6[%c32, %c0_11] : memref<36x768xf32, #tpu.memory_space<vmem>>, vector<4x384xf32>
    tpu.vector_store %arg6[%c32, %c0_11], %18 {strides = array<i32>} : memref<36x768xf32, #tpu.memory_space<vmem>>, vector<4x384xf32>,
    %c1 = arith.constant 1 : index
    %c0_12 = arith.constant 0 : index
    %c0_13 = arith.constant 0 : index
    %20 = vector.load %arg1[%c1, %c0_12, %c0_13] : memref<2x4x432xf32, #tpu.memory_space<vmem>>, vector<1x4x432xf32>
    %21 = vector.shape_cast %20 : vector<1x4x432xf32> to vector<4x432xf32>
    %22 = vector.extract_strided_slice %21 {offsets = [0, 0], sizes = [4, 384], strides = [1, 1]} : vector<4x432xf32> to vector<4x384xf32>
    %c0_14 = arith.constant 0 : index
    %c384 = arith.constant 384 : index
    %23 = vector.load %arg6[%c0_14, %c384] : memref<36x768xf32, #tpu.memory_space<vmem>>, vector<4x384xf32>
    tpu.vector_store %arg6[%c0_14, %c384], %22 {strides = array<i32>} : memref<36x768xf32, #tpu.memory_space<vmem>>, vector<4x384xf32>,
    %24 = vector.extract_strided_slice %21 {offsets = [0, 1], sizes = [4, 384], strides = [1, 1]} : vector<4x432xf32> to vector<4x384xf32>
    %c4_15 = arith.constant 4 : index
    %c384_16 = arith.constant 384 : index
    %25 = vector.load %arg6[%c4_15, %c384_16] : memref<36x768xf32, #tpu.memory_space<vmem>>, vector<4x384xf32>
    tpu.vector_store %arg6[%c4_15, %c384_16], %24 {strides = array<i32>} : memref<36x768xf32, #tpu.memory_space<vmem>>, vector<4x384xf32>,
    %26 = vector.extract_strided_slice %21 {offsets = [0, 2], sizes = [4, 384], strides = [1, 1]} : vector<4x432xf32> to vector<4x384xf32>
    %c8_17 = arith.constant 8 : index
    %c384_18 = arith.constant 384 : index
    %27 = vector.load %arg6[%c8_17, %c384_18] : memref<36x768xf32, #tpu.memory_space<vmem>>, vector<4x384xf32>
    tpu.vector_store %arg6[%c8_17, %c384_18], %26 {strides = array<i32>} : memref<36x768xf32, #tpu.memory_space<vmem>>, vector<4x384xf32>,
    %28 = vector.extract_strided_slice %21 {offsets = [0, 18], sizes = [4, 384], strides = [1, 1]} : vector<4x432xf32> to vector<4x384xf32>
    %c12_19 = arith.constant 12 : index
    %c384_20 = arith.constant 384 : index
    %29 = vector.load %arg6[%c12_19, %c384_20] : memref<36x768xf32, #tpu.memory_space<vmem>>, vector<4x384xf32>
    tpu.vector_store %arg6[%c12_19, %c384_20], %28 {strides = array<i32>} : memref<36x768xf32, #tpu.memory_space<vmem>>, vector<4x384xf32>,
    %30 = vector.extract_strided_slice %21 {offsets = [0, 19], sizes = [4, 384], strides = [1, 1]} : vector<4x432xf32> to vector<4x384xf32>
    %c16_21 = arith.constant 16 : index
    %c384_22 = arith.constant 384 : index
    %31 = vector.load %arg6[%c16_21, %c384_22] : memref<36x768xf32, #tpu.memory_space<vmem>>, vector<4x384xf32>
    tpu.vector_store %arg6[%c16_21, %c384_22], %30 {strides = array<i32>} : memref<36x768xf32, #tpu.memory_space<vmem>>, vector<4x384xf32>,
    %32 = vector.extract_strided_slice %21 {offsets = [0, 20], sizes = [4, 384], strides = [1, 1]} : vector<4x432xf32> to vector<4x384xf32>
    %c20_23 = arith.constant 20 : index
    %c384_24 = arith.constant 384 : index
    %33 = vector.load %arg6[%c20_23, %c384_24] : memref<36x768xf32, #tpu.memory_space<vmem>>, vector<4x384xf32>
    tpu.vector_store %arg6[%c20_23, %c384_24], %32 {strides = array<i32>} : memref<36x768xf32, #tpu.memory_space<vmem>>, vector<4x384xf32>,
    %34 = vector.extract_strided_slice %21 {offsets = [0, 36], sizes = [4, 384], strides = [1, 1]} : vector<4x432xf32> to vector<4x384xf32>
    %c24_25 = arith.constant 24 : index
    %c384_26 = arith.constant 384 : index
    %35 = vector.load %arg6[%c24_25, %c384_26] : memref<36x768xf32, #tpu.memory_space<vmem>>, vector<4x384xf32>
    tpu.vector_store %arg6[%c24_25, %c384_26], %34 {strides = array<i32>} : memref<36x768xf32, #tpu.memory_space<vmem>>, vector<4x384xf32>,
    %36 = vector.extract_strided_slice %21 {offsets = [0, 37], sizes = [4, 384], strides = [1, 1]} : vector<4x432xf32> to vector<4x384xf32>
    %c28_27 = arith.constant 28 : index
    %c384_28 = arith.constant 384 : index
    %37 = vector.load %arg6[%c28_27, %c384_28] : memref<36x768xf32, #tpu.memory_space<vmem>>, vector<4x384xf32>
    tpu.vector_store %arg6[%c28_27, %c384_28], %36 {strides = array<i32>} : memref<36x768xf32, #tpu.memory_space<vmem>>, vector<4x384xf32>,
    %38 = vector.extract_strided_slice %21 {offsets = [0, 38], sizes = [4, 384], strides = [1, 1]} : vector<4x432xf32> to vector<4x384xf32>
    %c32_29 = arith.constant 32 : index
    %c384_30 = arith.constant 384 : index
    %39 = vector.load %arg6[%c32_29, %c384_30] : memref<36x768xf32, #tpu.memory_space<vmem>>, vector<4x384xf32>
    tpu.vector_store %arg6[%c32_29, %c384_30], %38 {strides = array<i32>} : memref<36x768xf32, #tpu.memory_space<vmem>>, vector<4x384xf32>,
    %c0_31 = arith.constant 0 : index
    %c0_32 = arith.constant 0 : index
    %40 = vector.load %arg2[%c0_31, %c0_32] : memref<8x36xf32, #tpu.memory_space<vmem>>, vector<8x36xf32>
    %c0_33 = arith.constant 0 : index
    %c0_34 = arith.constant 0 : index
    %41 = vector.load %arg6[%c0_33, %c0_34] : memref<36x768xf32, #tpu.memory_space<vmem>>, vector<36x768xf32>
    %cst = arith.constant dense<0.000000e+00> : vector<8x768xf32>
    %42 = tpu.matmul %40, %41, %cst {dimension_numbers = #tpu.dot_dimension_numbers<[1], [0], [0], [1], [0, 0, 1, 1], [], []>} : vector<8x36xf32>, vector<36x768xf32>, vector<8x768xf32> -> vector<8x768xf32>
    %c0_35 = arith.constant 0 : index
    %c0_36 = arith.constant 0 : index
    %43 = vector.load %arg3[%c0_35, %c0_36] : memref<8x1xf32, #tpu.memory_space<vmem>>, vector<8x1xf32>
    %44 = vector.broadcast %43 : vector<8x1xf32> to vector<8x768xf32>
    %45 = arith.mulf %42, %44 : vector<8x768xf32>
    %c0_37 = arith.constant 0 : index
    %c0_38 = arith.constant 0 : index
    %46 = vector.load %arg4[%c0_37, %c0_38] : memref<8x1xf32, #tpu.memory_space<vmem>>, vector<8x1xf32>
    %47 = vector.broadcast %46 : vector<8x1xf32> to vector<8x768xf32>
    %48 = arith.addf %45, %47 : vector<8x768xf32>
    %49 = arith.negf %48 : vector<8x768xf32>
    %50 = math.exp %49 : vector<8x768xf32>
    %cst_39 = arith.constant 1.000000e+00 : f32
    %51 = vector.broadcast %cst_39 : f32 to vector<8x768xf32>
    %52 = arith.addf %51, %50 : vector<8x768xf32>
    %53 = arith.divf %51, %52 : vector<8x768xf32>
    %54 = arith.mulf %48, %53 : vector<8x768xf32>
    %55 = vector.extract_strided_slice %54 {offsets = [0, 0], sizes = [8, 384], strides = [1, 1]} : vector<8x768xf32> to vector<8x384xf32>
    %c0_40 = arith.constant 0 : index
    %c0_41 = arith.constant 0 : index
    %c0_42 = arith.constant 0 : index
    %56 = vector.load %arg5[%c0_40, %c0_41, %c0_42] : memref<2x8x384xf32, #tpu.memory_space<vmem>>, vector<1x8x384xf32>
    %57 = vector.shape_cast %56 : vector<1x8x384xf32> to vector<8x384xf32>
    %58 = vector.shape_cast %55 : vector<8x384xf32> to vector<1x8x384xf32>
    tpu.vector_store %arg5[%c0_40, %c0_41, %c0_42], %58 {strides = array<i32>} : memref<2x8x384xf32, #tpu.memory_space<vmem>>, vector<1x8x384xf32>,
    %59 = vector.extract_strided_slice %54 {offsets = [0, 384], sizes = [8, 384], strides = [1, 1]} : vector<8x768xf32> to vector<8x384xf32>
    %c1_43 = arith.constant 1 : index
    %c0_44 = arith.constant 0 : index
    %c0_45 = arith.constant 0 : index
    %60 = vector.load %arg5[%c1_43, %c0_44, %c0_45] : memref<2x8x384xf32, #tpu.memory_space<vmem>>, vector<1x8x384xf32>
    %61 = vector.shape_cast %60 : vector<1x8x384xf32> to vector<8x384xf32>
    %62 = vector.shape_cast %59 : vector<8x384xf32> to vector<1x8x384xf32>
    tpu.vector_store %arg5[%c1_43, %c0_44, %c0_45], %62 {strides = array<i32>} : memref<2x8x384xf32, #tpu.memory_space<vmem>>, vector<1x8x384xf32>,
    return
  }
  func.func @transform_0(%arg0: i32) -> (i32, i32, i32) {
    %c0_i32 = arith.constant 0 : i32
    %c0_i32_0 = arith.constant 0 : i32
    %c0_i32_1 = arith.constant 0 : i32
    return %arg0, %c0_i32, %c0_i32_0 : i32, i32, i32
  }
  func.func @transform_1(%arg0: i32) -> (i32, i32) {
    %c0_i32 = arith.constant 0 : i32
    %c0_i32_0 = arith.constant 0 : i32
    %c0_i32_1 = arith.constant 0 : i32
    return %c0_i32, %c0_i32_0 : i32, i32
  }
  func.func @transform_2(%arg0: i32) -> (i32, i32) {
    %c0_i32 = arith.constant 0 : i32
    %c0_i32_0 = arith.constant 0 : i32
    %c0_i32_1 = arith.constant 0 : i32
    return %c0_i32, %c0_i32_0 : i32, i32
  }
  func.func @transform_3(%arg0: i32) -> (i32, i32) {
    %c0_i32 = arith.constant 0 : i32
    %c0_i32_0 = arith.constant 0 : i32
    %c0_i32_1 = arith.constant 0 : i32
    return %c0_i32, %c0_i32_0 : i32, i32
  }
  func.func @transform_4(%arg0: i32) -> (i32, i32, i32) {
    %c0_i32 = arith.constant 0 : i32
    %c0_i32_0 = arith.constant 0 : i32
    %c0_i32_1 = arith.constant 0 : i32
    return %arg0, %c0_i32, %c0_i32_0 : i32, i32, i32
  }
}

</mosaic_0001>

<llo_original>
// kernel: tpu_custom_call.1
$region0: #{tpu_custom_call.1}
  #allocation0 [shape = 'u32[]', space=smem, size = 0x4, offset = 0x4, fixed_abs, tag = 'smem constant byte address 0x4 - core index']
  #allocation1 [shape = 'u32[144,128]{1,0:T(1,128)}', space=vmem, size = 0x12000, scoped, tag = 'internal scratch']
  #allocation2 [shape = 'f32[36,768]{1,0:T(8,128)}', space=vmem, size = 0x1e000, scoped, tag = 'scratch operand']
  %s0 = inlined_call_operand.hbm [shape: f32[2,4,432], index: 0, kind: input, shape index: {}]
  %s1 = inlined_call_operand.vmem [shape: f32[8,36], index: 1, kind: input, shape index: {}]
  %s2 = inlined_call_operand.vmem [shape: f32[8,1], index: 2, kind: input, shape index: {}]
  %s3 = inlined_call_operand.vmem [shape: f32[8,1], index: 3, kind: input, shape index: {}]
  %s4 = inlined_call_operand.hbm [shape: f32[2,8,384], index: 4, kind: output, shape index: {}]
  %s5 = sld [smem:[#allocation0]]
  $region30: #{tpu_custom_call.1} parent=0
    _
  %s7 = ssub.s32 1, %s5
  %s8 = scalar_select 0, %s7, %s5
  $region1: #{tpu_custom_call.1} parent=0
    #allocation3 [shape = 'u8[16384]{0}', space=vmem, size = 0x4000, scoped, tag = 'input window, operand 0, single buffered']
    #allocation4 [shape = 's32[1]{0}', space=sflag, size = 0x4, scoped, tag = 'scoped memory for tpu_custom_call.1']
    #allocation5 [shape = 's32[1]{0}', space=sflag, size = 0x4, scoped, tag = 'scoped memory for tpu_custom_call.1']
    #allocation6 [shape = 'u8[24576]{0}', space=vmem, size = 0x6000, scoped, tag = 'output window, operand 0, single buffered']
    %9 = vsyncpa [#allocation4], 0
    %10 = vsyncpa [#allocation5], 0
    // Predicated region
    $region2: #{tpu_custom_call.1} parent=1 // pred_check
      _
    $region3: #{tpu_custom_call.1} parent=1 // pred_check_branch
      %12 = sbr.rel (0) target = $region5
    $region4: #{tpu_custom_call.1} parent=1 // pred_region
      %s14 = ssub.s32 512, 512
      %15 = vsyncadd [#allocation4], %s14
      %s16 = sshll.u32 [#allocation3], 4
      %s17 = int_to_ptr.vmem [resolvable:$true] %s16
      %22 = dma.hbm_to_vmem [thread:$0]  %s0, 512, %s17, [#allocation4], 256, 256, 16
    $region5: #{tpu_custom_call.1} parent=1 // pred_fallthru
      _
    // Predicated region
    $region6: #{tpu_custom_call.1} parent=1 // pred_check
      _
    $region7: #{tpu_custom_call.1} parent=1 // pred_check_branch
      %24 = sbr.rel (0) target = $region9
    $region8: #{tpu_custom_call.1} parent=1 // pred_region
      _
    $region9: #{tpu_custom_call.1} parent=1 // pred_fallthru
      _
    // Predicated region
    $region10: #{tpu_custom_call.1} parent=1 // pred_check
      _
    $region11: #{tpu_custom_call.1} parent=1 // pred_check_branch
      %26 = sbr.rel (0) target = $region13
    $region12: #{tpu_custom_call.1} parent=1 // pred_region
      _
    $region13: #{tpu_custom_call.1} parent=1 // pred_fallthru
      _
    // Predicated region
    $region14: #{tpu_custom_call.1} parent=1 // pred_check
      _
    $region15: #{tpu_custom_call.1} parent=1 // pred_check_branch
      %28 = sbr.rel (0) target = $region17
    $region16: #{tpu_custom_call.1} parent=1 // pred_region
      _
    $region17: #{tpu_custom_call.1} parent=1 // pred_fallthru
      _
    // Predicated region
    $region18: #{tpu_custom_call.1} parent=1 // pred_check
      _
    $region19: #{tpu_custom_call.1} parent=1 // pred_check_branch
      %30 = sbr.rel (0) target = $region21
    $region20: #{tpu_custom_call.1} parent=1 // pred_region
      %31 = dma.done [#allocation4], 512
    $region21: #{tpu_custom_call.1} parent=1 // pred_fallthru
      _
    %v32 = vld [vmem:[#allocation3] sm:$0xff]
    %v33 = vld [vmem:[#allocation3 + $0x8] sm:$0xff]
    %v36 = vcombine.high %v32, %v32
    %38 = vst [vmem:[#allocation2] sm:$0xf] %v32
    %39 = vst [vmem:[#allocation2 + $0x8] sm:$0xf] %v36
    %40 = vst [vmem:[#allocation2 + $0x10] sm:$0xf] %v33
    %v41 = vcombine.low %v32, %v32
    %v42 = vcombine.low %v33, %v33
    %43 = vrot.lane.b32.xlu0 %v41, 127
    %v44 = vpop.permute.xlu0 %43
    %45 = vrot.lane.b32.xlu0 %v32, 127
    %v46 = vpop.permute.xlu0 %45
    %47 = vrot.lane.b32.xlu0 %v42, 127
    %v48 = vpop.permute.xlu0 %47
    %49 = vrot.lane.b32.xlu0 %v33, 127
    %v50 = vpop.permute.xlu0 %49
    %vm51 = vcmask 1039360
    %v52 = vsel %vm51, %v44, %v46
    %v53 = vsel %vm51, %v46, %v48
    %v54 = vsel %vm51, %v48, %v50
    %58 = vst [vmem:[#allocation2] sm:$0xf0] %v52
    %59 = vst [vmem:[#allocation2 + $0x8] sm:$0xf0] %v53
    %60 = vst [vmem:[#allocation2 + $0x10] sm:$0xf0] %v54
    %v61 = vcombine.high %v33, %v33
    %62 = vrot.lane.b32.xlu0 %v32, 126
    %v63 = vpop.permute.xlu0 %62
    %64 = vrot.lane.b32.xlu0 %v36, 126
    %v65 = vpop.permute.xlu0 %64
    %66 = vrot.lane.b32.xlu0 %v33, 126
    %v67 = vpop.permute.xlu0 %66
    %68 = vrot.lane.b32.xlu0 %v61, 126
    %v69 = vpop.permute.xlu0 %68
    %vm70 = vcmask 1031168
    %v71 = vsel %vm70, %v63, %v65
    %v72 = vsel %vm70, %v65, %v67
    %v73 = vsel %vm70, %v67, %v69
    %77 = vst [vmem:[#allocation2 + $0x30] sm:$0xf] %v71
    %78 = vst [vmem:[#allocation2 + $0x38] sm:$0xf] %v72
    %79 = vst [vmem:[#allocation2 + $0x40] sm:$0xf] %v73
    %80 = vrot.lane.b32.xlu0 %v41, 110
    %v81 = vpop.permute.xlu0 %80
    %82 = vrot.lane.b32.xlu0 %v32, 110
    %v83 = vpop.permute.xlu0 %82
    %84 = vrot.lane.b32.xlu0 %v42, 110
    %v85 = vpop.permute.xlu0 %84
    %86 = vrot.lane.b32.xlu0 %v33, 110
    %v87 = vpop.permute.xlu0 %86
    %vm88 = vcmask 900096
    %v89 = vsel %vm88, %v81, %v83
    %v90 = vsel %vm88, %v83, %v85
    %v91 = vsel %vm88, %v85, %v87
    %95 = vst [vmem:[#allocation2 + $0x30] sm:$0xf0] %v89
    %96 = vst [vmem:[#allocation2 + $0x38] sm:$0xf0] %v90
    %97 = vst [vmem:[#allocation2 + $0x40] sm:$0xf0] %v91
    %98 = vrot.lane.b32.xlu0 %v32, 109
    %v99 = vpop.permute.xlu0 %98
    %100 = vrot.lane.b32.xlu0 %v36, 109
    %v101 = vpop.permute.xlu0 %100
    %102 = vrot.lane.b32.xlu0 %v33, 109
    %v103 = vpop.permute.xlu0 %102
    %104 = vrot.lane.b32.xlu0 %v61, 109
    %v105 = vpop.permute.xlu0 %104
    %vm106 = vcmask 891904
    %v107 = vsel %vm106, %v99, %v101
    %v108 = vsel %vm106, %v101, %v103
    %v109 = vsel %vm106, %v103, %v105
    %113 = vst [vmem:[#allocation2 + $0x60] sm:$0xf] %v107
    %114 = vst [vmem:[#allocation2 + $0x68] sm:$0xf] %v108
    %115 = vst [vmem:[#allocation2 + $0x70] sm:$0xf] %v109
    %116 = vrot.lane.b32.xlu0 %v41, 108
    %v117 = vpop.permute.xlu0 %116
    %118 = vrot.lane.b32.xlu0 %v32, 108
    %v119 = vpop.permute.xlu0 %118
    %120 = vrot.lane.b32.xlu0 %v42, 108
    %v121 = vpop.permute.xlu0 %120
    %122 = vrot.lane.b32.xlu0 %v33, 108
    %v123 = vpop.permute.xlu0 %122
    %vm124 = vcmask 883712
    %v125 = vsel %vm124, %v117, %v119
    %v126 = vsel %vm124, %v119, %v121
    %v127 = vsel %vm124, %v121, %v123
    %131 = vst [vmem:[#allocation2 + $0x60] sm:$0xf0] %v125
    %132 = vst [vmem:[#allocation2 + $0x68] sm:$0xf0] %v126
    %133 = vst [vmem:[#allocation2 + $0x70] sm:$0xf0] %v127
    %134 = vrot.lane.b32.xlu0 %v32, 92
    %v135 = vpop.permute.xlu0 %134
    %136 = vrot.lane.b32.xlu0 %v36, 92
    %v137 = vpop.permute.xlu0 %136
    %138 = vrot.lane.b32.xlu0 %v33, 92
    %v139 = vpop.permute.xlu0 %138
    %140 = vrot.lane.b32.xlu0 %v61, 92
    %v141 = vpop.permute.xlu0 %140
    %vm142 = vcmask 752640
    %v143 = vsel %vm142, %v135, %v137
    %v144 = vsel %vm142, %v137, %v139
    %v145 = vsel %vm142, %v139, %v141
    %149 = vst [vmem:[#allocation2 + $0x90] sm:$0xf] %v143
    %150 = vst [vmem:[#allocation2 + $0x98] sm:$0xf] %v144
    %151 = vst [vmem:[#allocation2 + $0xa0] sm:$0xf] %v145
    %152 = vrot.lane.b32.xlu0 %v41, 91
    %v153 = vpop.permute.xlu0 %152
    %154 = vrot.lane.b32.xlu0 %v32, 91
    %v155 = vpop.permute.xlu0 %154
    %156 = vrot.lane.b32.xlu0 %v42, 91
    %v157 = vpop.permute.xlu0 %156
    %158 = vrot.lane.b32.xlu0 %v33, 91
    %v159 = vpop.permute.xlu0 %158
    %vm160 = vcmask 744448
    %v161 = vsel %vm160, %v153, %v155
    %v162 = vsel %vm160, %v155, %v157
    %v163 = vsel %vm160, %v157, %v159
    %167 = vst [vmem:[#allocation2 + $0x90] sm:$0xf0] %v161
    %168 = vst [vmem:[#allocation2 + $0x98] sm:$0xf0] %v162
    %169 = vst [vmem:[#allocation2 + $0xa0] sm:$0xf0] %v163
    %170 = vrot.lane.b32.xlu0 %v32, 90
    %v171 = vpop.permute.xlu0 %170
    %172 = vrot.lane.b32.xlu0 %v36, 90
    %v173 = vpop.permute.xlu0 %172
    %174 = vrot.lane.b32.xlu0 %v33, 90
    %v175 = vpop.permute.xlu0 %174
    %176 = vrot.lane.b32.xlu0 %v61, 90
    %v177 = vpop.permute.xlu0 %176
    %vm178 = vcmask 736256
    %v179 = vsel %vm178, %v171, %v173
    %v180 = vsel %vm178, %v173, %v175
    %v181 = vsel %vm178, %v175, %v177
    %185 = vst [vmem:[#allocation2 + $0xc0] sm:$0xf] %v179
    %186 = vst [vmem:[#allocation2 + $0xc8] sm:$0xf] %v180
    %187 = vst [vmem:[#allocation2 + $0xd0] sm:$0xf] %v181
    %s188 = scalar_lea.vmem [#allocation3], 16
    %v189 = vld [vmem:[%s188] sm:$0xff]
    %v190 = vld [vmem:[%s188 + $0x8] sm:$0xff]
    %v193 = vcombine.high %v189, %v189
    %195 = vst [vmem:[#allocation2 + $0x18] sm:$0xf] %v189
    %196 = vst [vmem:[#allocation2 + $0x20] sm:$0xf] %v193
    %197 = vst [vmem:[#allocation2 + $0x28] sm:$0xf] %v190
    %v198 = vcombine.low %v189, %v189
    %v199 = vcombine.low %v190, %v190
    %200 = vrot.lane.b32.xlu0 %v198, 127
    %v201 = vpop.permute.xlu0 %200
    %202 = vrot.lane.b32.xlu0 %v189, 127
    %v203 = vpop.permute.xlu0 %202
    %204 = vrot.lane.b32.xlu0 %v199, 127
    %v205 = vpop.permute.xlu0 %204
    %206 = vrot.lane.b32.xlu0 %v190, 127
    %v207 = vpop.permute.xlu0 %206
    %v208 = vsel %vm51, %v201, %v203
    %v209 = vsel %vm51, %v203, %v205
    %v210 = vsel %vm51, %v205, %v207
    %214 = vst [vmem:[#allocation2 + $0x18] sm:$0xf0] %v208
    %215 = vst [vmem:[#allocation2 + $0x20] sm:$0xf0] %v209
    %216 = vst [vmem:[#allocation2 + $0x28] sm:$0xf0] %v210
    %v217 = vcombine.high %v190, %v190
    %218 = vrot.lane.b32.xlu0 %v189, 126
    %v219 = vpop.permute.xlu0 %218
    %220 = vrot.lane.b32.xlu0 %v193, 126
    %v221 = vpop.permute.xlu0 %220
    %222 = vrot.lane.b32.xlu0 %v190, 126
    %v223 = vpop.permute.xlu0 %222
    %224 = vrot.lane.b32.xlu0 %v217, 126
    %v225 = vpop.permute.xlu0 %224
    %v226 = vsel %vm70, %v219, %v221
    %v227 = vsel %vm70, %v221, %v223
    %v228 = vsel %vm70, %v223, %v225
    %232 = vst [vmem:[#allocation2 + $0x48] sm:$0xf] %v226
    %233 = vst [vmem:[#allocation2 + $0x50] sm:$0xf] %v227
    %234 = vst [vmem:[#allocation2 + $0x58] sm:$0xf] %v228
    %235 = vrot.lane.b32.xlu0 %v198, 110
    %v236 = vpop.permute.xlu0 %235
    %237 = vrot.lane.b32.xlu0 %v189, 110
    %v238 = vpop.permute.xlu0 %237
    %239 = vrot.lane.b32.xlu0 %v199, 110
    %v240 = vpop.permute.xlu0 %239
    %241 = vrot.lane.b32.xlu0 %v190, 110
    %v242 = vpop.permute.xlu0 %241
    %v243 = vsel %vm88, %v236, %v238
    %v244 = vsel %vm88, %v238, %v240
    %v245 = vsel %vm88, %v240, %v242
    %249 = vst [vmem:[#allocation2 + $0x48] sm:$0xf0] %v243
    %250 = vst [vmem:[#allocation2 + $0x50] sm:$0xf0] %v244
    %251 = vst [vmem:[#allocation2 + $0x58] sm:$0xf0] %v245
    %252 = vrot.lane.b32.xlu0 %v189, 109
    %v253 = vpop.permute.xlu0 %252
    %254 = vrot.lane.b32.xlu0 %v193, 109
    %v255 = vpop.permute.xlu0 %254
    %256 = vrot.lane.b32.xlu0 %v190, 109
    %v257 = vpop.permute.xlu0 %256
    %258 = vrot.lane.b32.xlu0 %v217, 109
    %v259 = vpop.permute.xlu0 %258
    %v260 = vsel %vm106, %v253, %v255
    %v261 = vsel %vm106, %v255, %v257
    %v262 = vsel %vm106, %v257, %v259
    %266 = vst [vmem:[#allocation2 + $0x78] sm:$0xf] %v260
    %267 = vst [vmem:[#allocation2 + $0x80] sm:$0xf] %v261
    %268 = vst [vmem:[#allocation2 + $0x88] sm:$0xf] %v262
    %269 = vrot.lane.b32.xlu0 %v198, 108
    %v270 = vpop.permute.xlu0 %269
    %271 = vrot.lane.b32.xlu0 %v189, 108
    %v272 = vpop.permute.xlu0 %271
    %273 = vrot.lane.b32.xlu0 %v199, 108
    %v274 = vpop.permute.xlu0 %273
    %275 = vrot.lane.b32.xlu0 %v190, 108
    %v276 = vpop.permute.xlu0 %275
    %v277 = vsel %vm124, %v270, %v272
    %v278 = vsel %vm124, %v272, %v274
    %v279 = vsel %vm124, %v274, %v276
    %283 = vst [vmem:[#allocation2 + $0x78] sm:$0xf0] %v277
    %284 = vst [vmem:[#allocation2 + $0x80] sm:$0xf0] %v278
    %285 = vst [vmem:[#allocation2 + $0x88] sm:$0xf0] %v279
    %286 = vrot.lane.b32.xlu0 %v189, 92
    %v287 = vpop.permute.xlu0 %286
    %288 = vrot.lane.b32.xlu0 %v193, 92
    %v289 = vpop.permute.xlu0 %288
    %290 = vrot.lane.b32.xlu0 %v190, 92
    %v291 = vpop.permute.xlu0 %290
    %292 = vrot.lane.b32.xlu0 %v217, 92
    %v293 = vpop.permute.xlu0 %292
    %v294 = vsel %vm142, %v287, %v289
    %v295 = vsel %vm142, %v289, %v291
    %v296 = vsel %vm142, %v291, %v293
    %300 = vst [vmem:[#allocation2 + $0xa8] sm:$0xf] %v294
    %301 = vst [vmem:[#allocation2 + $0xb0] sm:$0xf] %v295
    %302 = vst [vmem:[#allocation2 + $0xb8] sm:$0xf] %v296
    %303 = vrot.lane.b32.xlu0 %v198, 91
    %v304 = vpop.permute.xlu0 %303
    %305 = vrot.lane.b32.xlu0 %v189, 91
    %v306 = vpop.permute.xlu0 %305
    %307 = vrot.lane.b32.xlu0 %v199, 91
    %v308 = vpop.permute.xlu0 %307
    %309 = vrot.lane.b32.xlu0 %v190, 91
    %v310 = vpop.permute.xlu0 %309
    %v311 = vsel %vm160, %v304, %v306
    %v312 = vsel %vm160, %v306, %v308
    %v313 = vsel %vm160, %v308, %v310
    %317 = vst [vmem:[#allocation2 + $0xa8] sm:$0xf0] %v311
    %318 = vst [vmem:[#allocation2 + $0xb0] sm:$0xf0] %v312
    %319 = vst [vmem:[#allocation2 + $0xb8] sm:$0xf0] %v313
    %320 = vrot.lane.b32.xlu0 %v189, 90
    %v321 = vpop.permute.xlu0 %320
    %322 = vrot.lane.b32.xlu0 %v193, 90
    %v323 = vpop.permute.xlu0 %322
    %324 = vrot.lane.b32.xlu0 %v190, 90
    %v325 = vpop.permute.xlu0 %324
    %326 = vrot.lane.b32.xlu0 %v217, 90
    %v327 = vpop.permute.xlu0 %326
    %v328 = vsel %vm178, %v321, %v323
    %v329 = vsel %vm178, %v323, %v325
    %v330 = vsel %vm178, %v325, %v327
    %334 = vst [vmem:[#allocation2 + $0xd8] sm:$0xf] %v328
    %335 = vst [vmem:[#allocation2 + $0xe0] sm:$0xf] %v329
    %336 = vst [vmem:[#allocation2 + $0xe8] sm:$0xf] %v330
    %v337 = vld [vmem:[%s1] sm:$0xff]
    %v338 = vld [vmem:[#allocation2] sm:$0xff]
    %v339 = vld [vmem:[#allocation2 + $0x8] sm:$0xff]
    %v340 = vld [vmem:[#allocation2 + $0x10] sm:$0xff]
    %v341 = vld [vmem:[#allocation2 + $0x18] sm:$0xff]
    %v342 = vld [vmem:[#allocation2 + $0x20] sm:$0xff]
    %v343 = vld [vmem:[#allocation2 + $0x28] sm:$0xff]
    %v344 = vld [vmem:[#allocation2 + $0x30] sm:$0xff]
    %v345 = vld [vmem:[#allocation2 + $0x38] sm:$0xff]
    %v346 = vld [vmem:[#allocation2 + $0x40] sm:$0xff]
    %v347 = vld [vmem:[#allocation2 + $0x48] sm:$0xff]
    %v348 = vld [vmem:[#allocation2 + $0x50] sm:$0xff]
    %v349 = vld [vmem:[#allocation2 + $0x58] sm:$0xff]
    %v350 = vld [vmem:[#allocation2 + $0x60] sm:$0xff]
    %v351 = vld [vmem:[#allocation2 + $0x68] sm:$0xff]
    %v352 = vld [vmem:[#allocation2 + $0x70] sm:$0xff]
    %v353 = vld [vmem:[#allocation2 + $0x78] sm:$0xff]
    %v354 = vld [vmem:[#allocation2 + $0x80] sm:$0xff]
    %v355 = vld [vmem:[#allocation2 + $0x88] sm:$0xff]
    %v356 = vld [vmem:[#allocation2 + $0x90] sm:$0xff]
    %v357 = vld [vmem:[#allocation2 + $0x98] sm:$0xff]
    %v358 = vld [vmem:[#allocation2 + $0xa0] sm:$0xff]
    %v359 = vld [vmem:[#allocation2 + $0xa8] sm:$0xff]
    %v360 = vld [vmem:[#allocation2 + $0xb0] sm:$0xff]
    %v361 = vld [vmem:[#allocation2 + $0xb8] sm:$0xff]
    %v362 = vld [vmem:[#allocation2 + $0xc0] sm:$0xf]
    %v363 = vld [vmem:[#allocation2 + $0xc8] sm:$0xf]
    %v364 = vld [vmem:[#allocation2 + $0xd0] sm:$0xf]
    %v365 = vld [vmem:[#allocation2 + $0xd8] sm:$0xf]
    %v366 = vld [vmem:[#allocation2 + $0xe0] sm:$0xf]
    %v367 = vld [vmem:[#allocation2 + $0xe8] sm:$0xf]
    %vm368 = vcmask 293888
    %v370 = vsel %vm368, %v337, 0
    %vm372 = vcmask 1043456
    %v374 = vsel %vm372, %v362, 0
    %v377 = vsel %vm372, %v363, 0
    %v380 = vsel %vm372, %v364, 0
    %v383 = vsel %vm372, %v365, 0
    %v386 = vsel %vm372, %v366, 0
    %v389 = vsel %vm372, %v367, 0
    %391 = vmatprep.subr.mxu0 0.0
    %392 = vmatpush1.msra.mxu0 0.0
    %393 = vmatprep.subr.mxu0 0.0
    %394 = vmatpush1.msra.mxu0 0.0
    %395 = vmatprep.subr.mxu0 0.0
    %396 = vmatpush1.msra.mxu0 0.0
    %397 = vmatprep.subr.mxu0 0.0
    %398 = vmatpush1.msra.mxu0 0.0
    %399 = vmatprep.subr.mxu0 0.0
    %400 = vmatpush1.msra.mxu0 0.0
    %401 = vmatprep.subr.mxu0 0.0
    %402 = vmatpush1.msra.mxu0 0.0
    %403 = vmatprep.subr.mxu0 0.0
    %404 = vmatpush1.msra.mxu0 0.0
    %405 = vmatprep.subr.mxu0 0.0
    %406 = vmatpush1.msra.mxu0 0.0
    %407 = vmatprep.subr.mxu0 0.0
    %408 = vmatpush1.msra.mxu0 0.0
    %409 = vmatprep.subr.mxu0 0.0
    %410 = vmatpush1.msra.mxu0 0.0
    %411 = vmatprep.subr.mxu0 0.0
    %412 = vmatpush1.msra.mxu0 0.0
    %413 = vmatprep.subr.mxu0 %v377
    %414 = vmatpush1.msra.mxu0 %v374
    %415 = vmatprep.subr.mxu0 %v357
    %416 = vmatpush1.msra.mxu0 %v356
    %417 = vmatprep.subr.mxu0 %v351
    %418 = vmatpush1.msra.mxu0 %v350
    %419 = vmatprep.subr.mxu0 %v345
    %420 = vmatpush1.msra.mxu0 %v344
    %421 = vmatprep.subr.mxu0 %v339
    %422 = vmatpush1.msra.mxu0 %v338
    %423 = vmatprep.subr.mxu0 0.0
    %424 = vmatpush2.msra.mxu0 0.0
    %425 = vmatprep.subr.mxu0 0.0
    %426 = vmatpush2.msra.mxu0 0.0
    %427 = vmatprep.subr.mxu0 0.0
    %428 = vmatpush2.msra.mxu0 0.0
    %429 = vmatprep.subr.mxu0 0.0
    %430 = vmatpush2.msra.mxu0 0.0
    %431 = vmatprep.subr.mxu0 0.0
    %432 = vmatpush2.msra.mxu0 0.0
    %433 = vmatprep.subr.mxu0 0.0
    %434 = vmatpush2.msra.mxu0 0.0
    %435 = vmatprep.subr.mxu0 0.0
    %436 = vmatpush2.msra.mxu0 0.0
    %437 = vmatprep.subr.mxu0 0.0
    %438 = vmatpush2.msra.mxu0 0.0
    %439 = vmatprep.subr.mxu0 0.0
    %440 = vmatpush2.msra.mxu0 0.0
    %441 = vmatprep.subr.mxu0 0.0
    %442 = vmatpush2.msra.mxu0 0.0
    %443 = vmatprep.subr.mxu0 0.0
    %444 = vmatpush2.msra.mxu0 0.0
    %445 = vmatprep.subr.mxu0 0.0
    %446 = vmatpush2.msra.mxu0 0.0
    %447 = vmatprep.subr.mxu0 0.0
    %448 = vmatpush2.msra.mxu0 0.0
    %449 = vmatprep.subr.mxu0 0.0
    %450 = vmatpush2.msra.mxu0 0.0
    %451 = vmatprep.subr.mxu0 0.0
    %452 = vmatpush2.msra.mxu0 0.0
    %453 = vmatprep.subr.mxu0 0.0
    %454 = vmatpush2.msra.mxu0 0.0
    %455 = vmatprep.mubr.f32.mxu0 0.0
    %456 = vmatmul.mubr.f32.gmra.mxu0 %v370
    %v457 = vpop.f32.mrf.mxu0
    %v458 = vadd.f32 0.0, %v457
    %v459 = vpop.f32.mrf.mxu0
    %v460 = vadd.f32 0.0, %v459
    %461 = vdwg.mxu0
    %462 = vmatprep.subr.mxu0 0.0
    %463 = vmatpush1.msra.mxu0 0.0
    %464 = vmatprep.subr.mxu0 0.0
    %465 = vmatpush1.msra.mxu0 0.0
    %466 = vmatprep.subr.mxu0 0.0
    %467 = vmatpush1.msra.mxu0 0.0
    %468 = vmatprep.subr.mxu0 0.0
    %469 = vmatpush1.msra.mxu0 0.0
    %470 = vmatprep.subr.mxu0 0.0
    %471 = vmatpush1.msra.mxu0 0.0
    %472 = vmatprep.subr.mxu0 0.0
    %473 = vmatpush1.msra.mxu0 0.0
    %474 = vmatprep.subr.mxu0 0.0
    %475 = vmatpush1.msra.mxu0 0.0
    %476 = vmatprep.subr.mxu0 0.0
    %477 = vmatpush1.msra.mxu0 0.0
    %478 = vmatprep.subr.mxu0 0.0
    %479 = vmatpush1.msra.mxu0 0.0
    %480 = vmatprep.subr.mxu0 0.0
    %481 = vmatpush1.msra.mxu0 0.0
    %482 = vmatprep.subr.mxu0 0.0
    %483 = vmatpush1.msra.mxu0 0.0
    %484 = vmatprep.subr.mxu0 %v383
    %485 = vmatpush1.msra.mxu0 %v380
    %486 = vmatprep.subr.mxu0 %v359
    %487 = vmatpush1.msra.mxu0 %v358
    %488 = vmatprep.subr.mxu0 %v353
    %489 = vmatpush1.msra.mxu0 %v352
    %490 = vmatprep.subr.mxu0 %v347
    %491 = vmatpush1.msra.mxu0 %v346
    %492 = vmatprep.subr.mxu0 %v341
    %493 = vmatpush1.msra.mxu0 %v340
    %494 = vmatprep.subr.mxu0 0.0
    %495 = vmatpush2.msra.mxu0 0.0
    %496 = vmatprep.subr.mxu0 0.0
    %497 = vmatpush2.msra.mxu0 0.0
    %498 = vmatprep.subr.mxu0 0.0
    %499 = vmatpush2.msra.mxu0 0.0
    %500 = vmatprep.subr.mxu0 0.0
    %501 = vmatpush2.msra.mxu0 0.0
    %502 = vmatprep.subr.mxu0 0.0
    %503 = vmatpush2.msra.mxu0 0.0
    %504 = vmatprep.subr.mxu0 0.0
    %505 = vmatpush2.msra.mxu0 0.0
    %506 = vmatprep.subr.mxu0 0.0
    %507 = vmatpush2.msra.mxu0 0.0
    %508 = vmatprep.subr.mxu0 0.0
    %509 = vmatpush2.msra.mxu0 0.0
    %510 = vmatprep.subr.mxu0 0.0
    %511 = vmatpush2.msra.mxu0 0.0
    %512 = vmatprep.subr.mxu0 0.0
    %513 = vmatpush2.msra.mxu0 0.0
    %514 = vmatprep.subr.mxu0 0.0
    %515 = vmatpush2.msra.mxu0 0.0
    %516 = vmatprep.subr.mxu0 0.0
    %517 = vmatpush2.msra.mxu0 0.0
    %518 = vmatprep.subr.mxu0 0.0
    %519 = vmatpush2.msra.mxu0 0.0
    %520 = vmatprep.subr.mxu0 0.0
    %521 = vmatpush2.msra.mxu0 0.0
    %522 = vmatprep.subr.mxu0 0.0
    %523 = vmatpush2.msra.mxu0 0.0
    %524 = vmatprep.subr.mxu0 0.0
    %525 = vmatpush2.msra.mxu0 0.0
    %526 = vmatprep.mubr.f32.mxu0 0.0
    %527 = vmatmul.mubr.f32.gmra.mxu0 %v370
    %v528 = vpop.f32.mrf.mxu0
    %v529 = vadd.f32 0.0, %v528
    %v530 = vpop.f32.mrf.mxu0
    %v531 = vadd.f32 0.0, %v530
    %532 = vdwg.mxu0
    %533 = vmatprep.subr.mxu0 0.0
    %534 = vmatpush1.msra.mxu0 0.0
    %535 = vmatprep.subr.mxu0 0.0
    %536 = vmatpush1.msra.mxu0 0.0
    %537 = vmatprep.subr.mxu0 0.0
    %538 = vmatpush1.msra.mxu0 0.0
    %539 = vmatprep.subr.mxu0 0.0
    %540 = vmatpush1.msra.mxu0 0.0
    %541 = vmatprep.subr.mxu0 0.0
    %542 = vmatpush1.msra.mxu0 0.0
    %543 = vmatprep.subr.mxu0 0.0
    %544 = vmatpush1.msra.mxu0 0.0
    %545 = vmatprep.subr.mxu0 0.0
    %546 = vmatpush1.msra.mxu0 0.0
    %547 = vmatprep.subr.mxu0 0.0
    %548 = vmatpush1.msra.mxu0 0.0
    %549 = vmatprep.subr.mxu0 0.0
    %550 = vmatpush1.msra.mxu0 0.0
    %551 = vmatprep.subr.mxu0 0.0
    %552 = vmatpush1.msra.mxu0 0.0
    %553 = vmatprep.subr.mxu0 0.0
    %554 = vmatpush1.msra.mxu0 0.0
    %555 = vmatprep.subr.mxu0 %v389
    %556 = vmatpush1.msra.mxu0 %v386
    %557 = vmatprep.subr.mxu0 %v361
    %558 = vmatpush1.msra.mxu0 %v360
    %559 = vmatprep.subr.mxu0 %v355
    %560 = vmatpush1.msra.mxu0 %v354
    %561 = vmatprep.subr.mxu0 %v349
    %562 = vmatpush1.msra.mxu0 %v348
    %563 = vmatprep.subr.mxu0 %v343
    %564 = vmatpush1.msra.mxu0 %v342
    %565 = vmatprep.subr.mxu0 0.0
    %566 = vmatpush2.msra.mxu0 0.0
    %567 = vmatprep.subr.mxu0 0.0
    %568 = vmatpush2.msra.mxu0 0.0
    %569 = vmatprep.subr.mxu0 0.0
    %570 = vmatpush2.msra.mxu0 0.0
    %571 = vmatprep.subr.mxu0 0.0
    %572 = vmatpush2.msra.mxu0 0.0
    %573 = vmatprep.subr.mxu0 0.0
    %574 = vmatpush2.msra.mxu0 0.0
    %575 = vmatprep.subr.mxu0 0.0
    %576 = vmatpush2.msra.mxu0 0.0
    %577 = vmatprep.subr.mxu0 0.0
    %578 = vmatpush2.msra.mxu0 0.0
    %579 = vmatprep.subr.mxu0 0.0
    %580 = vmatpush2.msra.mxu0 0.0
    %581 = vmatprep.subr.mxu0 0.0
    %582 = vmatpush2.msra.mxu0 0.0
    %583 = vmatprep.subr.mxu0 0.0
    %584 = vmatpush2.msra.mxu0 0.0
    %585 = vmatprep.subr.mxu0 0.0
    %586 = vmatpush2.msra.mxu0 0.0
    %587 = vmatprep.subr.mxu0 0.0
    %588 = vmatpush2.msra.mxu0 0.0
    %589 = vmatprep.subr.mxu0 0.0
    %590 = vmatpush2.msra.mxu0 0.0
    %591 = vmatprep.subr.mxu0 0.0
    %592 = vmatpush2.msra.mxu0 0.0
    %593 = vmatprep.subr.mxu0 0.0
    %594 = vmatpush2.msra.mxu0 0.0
    %595 = vmatprep.subr.mxu0 0.0
    %596 = vmatpush2.msra.mxu0 0.0
    %597 = vmatprep.mubr.f32.mxu0 0.0
    %598 = vmatmul.mubr.f32.gmra.mxu0 %v370
    %v599 = vpop.f32.mrf.mxu0
    %v600 = vadd.f32 0.0, %v599
    %v601 = vpop.f32.mrf.mxu0
    %v602 = vadd.f32 0.0, %v601
    %603 = vdwg.mxu0
    %v604 = vld [vmem:[%s2] sm:$0xff]
    %606 = vset.pattern.permute.xlu0 0
    %607 = vperm.xlu0 %606, %v604
    %v608 = vpop.permute.xlu0 %607
    %v610 = vmul.f32 %v458, %v608
    %v611 = vmul.f32 %v460, %v608
    %v612 = vmul.f32 %v529, %v608
    %v613 = vmul.f32 %v531, %v608
    %v614 = vmul.f32 %v600, %v608
    %v615 = vmul.f32 %v602, %v608
    %v616 = vld [vmem:[%s3] sm:$0xff]
    %618 = vset.pattern.permute.xlu0 0
    %619 = vperm.xlu0 %618, %v616
    %v620 = vpop.permute.xlu0 %619
    %v622 = vadd.f32 %v610, %v620
    %v623 = vadd.f32 %v611, %v620
    %v624 = vadd.f32 %v612, %v620
    %v625 = vadd.f32 %v613, %v620
    %v626 = vadd.f32 %v614, %v620
    %v627 = vadd.f32 %v615, %v620
    %v628 = vxor.u32 %v622, 2147483648
    %v629 = vxor.u32 %v623, 2147483648
    %v630 = vxor.u32 %v624, 2147483648
    %v631 = vxor.u32 %v625, 2147483648
    %v632 = vxor.u32 %v626, 2147483648
    %v633 = vxor.u32 %v627, 2147483648
    %v634 = vmul.f32 %v628, 1.442695
    %v635 = vpow.pop %v634
    %v636 = vmul.f32 %v629, 1.442695
    %v637 = vpow.pop %v636
    %v638 = vmul.f32 %v630, 1.442695
    %v639 = vpow.pop %v638
    %v640 = vmul.f32 %v631, 1.442695
    %v641 = vpow.pop %v640
    %v642 = vmul.f32 %v632, 1.442695
    %v643 = vpow.pop %v642
    %v644 = vmul.f32 %v633, 1.442695
    %v645 = vpow.pop %v644
    %v646 = vadd.f32 %v635, 1.0
    %v647 = vadd.f32 %v637, 1.0
    %v648 = vadd.f32 %v639, 1.0
    %v649 = vadd.f32 %v641, 1.0
    %v650 = vadd.f32 %v643, 1.0
    %v651 = vadd.f32 %v645, 1.0
    %v652 = vrcp.pop %v646
    %v653 = vmul.f32 1.0, %v652
    %v654 = vrcp.pop %v647
    %v655 = vmul.f32 1.0, %v654
    %v656 = vrcp.pop %v648
    %v657 = vmul.f32 1.0, %v656
    %v658 = vrcp.pop %v649
    %v659 = vmul.f32 1.0, %v658
    %v660 = vrcp.pop %v650
    %v661 = vmul.f32 1.0, %v660
    %v662 = vrcp.pop %v651
    %v663 = vmul.f32 1.0, %v662
    %v664 = vmul.f32 %v622, %v653
    %v665 = vmul.f32 %v623, %v655
    %v666 = vmul.f32 %v624, %v657
    %v667 = vmul.f32 %v625, %v659
    %v668 = vmul.f32 %v626, %v661
    %v669 = vmul.f32 %v627, %v663
    %670 = vst [vmem:[#allocation6] sm:$0xff] %v664
    %671 = vst [vmem:[#allocation6 + $0x8] sm:$0xff] %v665
    %672 = vst [vmem:[#allocation6 + $0x10] sm:$0xff] %v666
    %s673 = scalar_lea.vmem [#allocation6], 24
    %674 = vst [vmem:[%s673] sm:$0xff] %v667
    %675 = vst [vmem:[%s673 + $0x8] sm:$0xff] %v668
    %676 = vst [vmem:[%s673 + $0x10] sm:$0xff] %v669
    // Predicated region
    $region22: #{tpu_custom_call.1} parent=1 // pred_check
      _
    $region23: #{tpu_custom_call.1} parent=1 // pred_check_branch
      %678 = sbr.rel (0) target = $region25
    $region24: #{tpu_custom_call.1} parent=1 // pred_region
      %s680 = ssub.s32 768, 768
      %681 = vsyncadd [#allocation5], %s680
      %s682 = sshll.u32 [#allocation6], 4
      %s683 = int_to_ptr.vmem [resolvable:$true] %s682
      %688 = dma.vmem_to_hbm [thread:$0]  %s683, 768, %s4, [#allocation5], 384, 384, 24
    $region25: #{tpu_custom_call.1} parent=1 // pred_fallthru
      _
    // Predicated region
    $region26: #{tpu_custom_call.1} parent=1 // pred_check
      _
    $region27: #{tpu_custom_call.1} parent=1 // pred_check_branch
      %690 = sbr.rel (0) target = $region29
    $region28: #{tpu_custom_call.1} parent=1 // pred_region
      %691 = dma.done [#allocation5], 768
    $region29: #{tpu_custom_call.1} parent=1 // pred_fallthru
      _
    %692 = vsyncpa [#allocation4], 1
    %693 = vsyncpa [#allocation5], 1

</llo_original>
